<compile_context>
chip_gen: v5e
topology: v5e:2x2
jax: 0.10.0
libtpu: 0.0.40
codegen_flags: <defaults>
</compile_context>

<pallas_src>
import functools

import jax
import jax.numpy as jnp
from jax.experimental import pallas as pl
from jax.experimental.pallas import tpu as pltpu

EPS = 1e-5
_VMEM_LIMIT = 32 * 1024 * 1024  # safe on v5e/v6e (128 MiB phys) and v7x (64 MiB phys)


def fused_conv_bn_kernel(w_ref, p_ref, g_ref, b_ref, o_ref,
                         y_vmem, sum_ref, scale_ref, shift_ref,
                         *, inv_m, pad_cols):
    """Fused conv (as matmul) + training-mode BatchNorm, y resident in VMEM.

    grid = (2, num_m_tiles), both axes "arbitrary" (sequential, state-carrying):
      phase 0: y_tile = W(OC,K) @ patches(K,TM) on the MXU -> y_vmem[i],
               accumulate per-channel sum.
      phase 1: step 0 computes mean, centered variance, scale, shift once;
               every step applies out = y * scale + shift (lane-dense store).
    """
    phase = pl.program_id(0)
    i = pl.program_id(1)

    @pl.when(phase == 0)
    def _conv_and_sum():
        @pl.when(i == 0)
        def _init():
            sum_ref[...] = jnp.zeros_like(sum_ref)

        y = jnp.dot(w_ref[...], p_ref[...],
                    preferred_element_type=jnp.float32)        # (OC, TM)
        y_vmem[i] = y
        sum_ref[...] += jnp.sum(y, axis=1, keepdims=True)

    @pl.when(phase == 1)
    def _normalize():
        @pl.when(i == 0)
        def _stats():
            mean = sum_ref[...] * inv_m                         # (OC, 1)
            # Two-pass centered variance over the resident y (numerically robust
            # even with a large per-channel DC component).
            c = y_vmem[...] - mean                              # (T, OC, TM)
            css = jnp.sum(jnp.sum(c * c, axis=2, keepdims=True), axis=0)  # (OC, 1)
            # Zero-padded columns (y == 0, valid only because conv bias is dropped)
            # each contributed exactly mean^2 to css; remove them analytically.
            var = (css - pad_cols * mean * mean) * inv_m        # biased, like PyTorch BN
            scale = g_ref[...] * jax.lax.rsqrt(var + EPS)
            scale_ref[...] = scale
            shift_ref[...] = b_ref[...] - mean * scale

        o_ref[...] = (y_vmem[i] * scale_ref[...] + shift_ref[...]).astype(o_ref.dtype)


def _im2col_T(x, kh, kw, stride, pad):
    """x: (N, C, H, W) -> patches^T (C*KH*KW, N*OH*OW).

    Valid only for stride == kernel (disjoint patches), which holds here
    (kernel=3, stride=3).  Padded rows/cols beyond stride*OH / stride*OW are
    never read by the convolution, so dropping them is exact.
    """
    n, c, h, w = x.shape
    oh = (h + 2 * pad - kh) // stride + 1
    ow = (w + 2 * pad - kw) // stride + 1
    xp = jnp.pad(x, ((0, 0), (0, 0),
                     (pad, stride * oh - h - pad),
                     (pad, stride * ow - w - pad)))
    xr = xp.reshape(n, c, oh, kh, ow, kw)
    # (c, kh, kw, n, oh, ow) -> (K, M); row order matches w.reshape(OC, C*KH*KW)
    return xr.transpose(1, 3, 5, 0, 2, 4).reshape(c * kh * kw, n * oh * ow), oh, ow


def model_forward(x, w, b, gamma, beta):
    """x: (N, 3, H, W); w: (8, 3, 3, 3); b, gamma, beta: (8,). Returns NCHW (N, 8, OH, OW)."""
    del b  # per-channel conv bias is exactly cancelled by training-mode BN mean subtraction
    n = x.shape[0]
    oc = w.shape[0]

    patches_t, oh, ow = _im2col_T(x, 3, 3, stride=3, pad=3)     # (K, M)
    k, m = patches_t.shape
    w_t = w.reshape(oc, k).astype(jnp.float32)                  # (OC, K)

    # Lane-dense M tile (multiple of 128), cap 2048 to amortize per-step overhead.
    tm = min(2048, ((m + 127) // 128) * 128)
    m_pad = pl.cdiv(m, tm) * tm
    num_tiles = m_pad // tm
    # Zero columns give y == 0 (no conv bias) -> exact sum; their centered-variance
    # contribution is removed analytically in-kernel.  XLA fuses this pad with the
    # im2col transpose/convert into a single copy.
    patches_t = jnp.pad(patches_t.astype(jnp.float32), ((0, 0), (0, m_pad - m)))

    kernel = functools.partial(fused_conv_bn_kernel,
                               inv_m=1.0 / m, pad_cols=float(m_pad - m))

    out = pl.pallas_call(
        kernel,
        out_shape=jax.ShapeDtypeStruct((oc, m_pad), jnp.float32),
        grid=(2, num_tiles),
        in_specs=[
            pl.BlockSpec((oc, k), lambda p, i: (0, 0)),            # weights, resident
            pl.BlockSpec((k, tm), lambda p, i: (0, i * (1 - p))),  # stream tiles only in phase 0
            pl.BlockSpec((oc, 1), lambda p, i: (0, 0)),            # gamma, resident
            pl.BlockSpec((oc, 1), lambda p, i: (0, 0)),            # beta, resident
        ],
        # Phase 0 never writes the output; park it on block 0 (no garbage writeback).
        # Phase 1 streams lane-dense (OC, TM) tiles.
        out_specs=pl.BlockSpec((oc, tm), lambda p, i: (0, i * p)),
        scratch_shapes=[
            pltpu.VMEM((num_tiles, oc, tm), jnp.float32),   # full y resident: 32*M B
            pltpu.VMEM((oc, 1), jnp.float32),               # per-channel sum
            pltpu.VMEM((oc, 1), jnp.float32),               # scale
            pltpu.VMEM((oc, 1), jnp.float32),               # shift
        ],
        compiler_params=pltpu.CompilerParams(
            dimension_semantics=("arbitrary", "arbitrary"),
            vmem_limit_bytes=_VMEM_LIMIT),
    )(w_t, patches_t,
      gamma.reshape(oc, 1).astype(jnp.float32),
      beta.reshape(oc, 1).astype(jnp.float32))

    # Columns ordered (n, oh, ow); per-image spatial (oh*ow) is below 128 lanes for
    # small shapes, so keep the lane-dense (OC, M) kernel layout and finish with one
    # small XLA transpose to NCHW.
    return out[:, :m].reshape(oc, n, oh, ow).transpose(1, 0, 2, 3)


def _reference(x, w, b, gamma, beta):
    y = jax.lax.conv_general_dilated(
        x, w, window_strides=(3, 3), padding=((3, 3), (3, 3)),
        dimension_numbers=("NCHW", "OIHW", "NCHW"))
    y = y + b.reshape(1, -1, 1, 1)
    mean = y.mean(axis=(0, 2, 3), keepdims=True)
    var = ((y - mean) ** 2).mean(axis=(0, 2, 3), keepdims=True)
    return (y - mean) / jnp.sqrt(var + EPS) * gamma.reshape(1, -1, 1, 1) + beta.reshape(1, -1, 1, 1)


if __name__ == "__main__":
    key = jax.random.PRNGKey(0)
    kx, kw, kb = jax.random.split(key, 3)

    # small shapes consistent with the module: batch=2, channels=3, spatial=16
    x = jax.random.normal(kx, (2, 3, 16, 16), dtype=jnp.float32)

    # Conv2d(3, 8, 3) parameters (deterministic, PyTorch-style uniform bound)
    fan_in = 3 * 3 * 3
    bound = 1.0 / jnp.sqrt(fan_in)
    w = jax.random.uniform(kw, (8, 3, 3, 3), minval=-bound, maxval=bound, dtype=jnp.float32)
    b = jax.random.uniform(kb, (8,), minval=-bound, maxval=bound, dtype=jnp.float32)

    # BatchNorm2d(8) affine params (default init)
    gamma = jnp.ones((8,), jnp.float32)
    beta = jnp.zeros((8,), jnp.float32)

    out = jax.block_until_ready(model_forward(x, w, b, gamma, beta))
    ref = jax.block_until_ready(_reference(x, w, b, gamma, beta))

    assert out.shape == (2, 8, 7, 7), out.shape
    assert jnp.allclose(out, ref, atol=1e-4, rtol=1e-4), float(jnp.abs(out - ref).max())
    print("KERNEL_OK")
</pallas_src>

<mosaic_0001>
module attributes {stable_mosaic.version = 11 : i64} {
  func.func @fused_conv_bn_kernel(%arg0: i32, %arg1: i32, %arg2: memref<8x27xf32, #tpu.memory_space<vmem>>, %arg3: memref<27x128xf32, #tpu.memory_space<vmem>>, %arg4: memref<8x1xf32, #tpu.memory_space<vmem>>, %arg5: memref<8x1xf32, #tpu.memory_space<vmem>>, %arg6: memref<8x128xf32, #tpu.memory_space<vmem>>, %arg7: memref<1x8x128xf32, #tpu.memory_space<vmem>>, %arg8: memref<8x1xf32, #tpu.memory_space<vmem>>, %arg9: memref<8x1xf32, #tpu.memory_space<vmem>>, %arg10: memref<8x1xf32, #tpu.memory_space<vmem>>) attributes {dimension_semantics = [#tpu.dimension_semantics<arbitrary>, #tpu.dimension_semantics<arbitrary>], iteration_bounds = array<i64: 2, 1>, scalar_prefetch = 0 : i64, scratch_operands = 4 : i64, tpu.core_type = #tpu.core_type<tc>, window_params = [{pipeline_mode = #tpu.pipeline_mode<synchronous>, transform_indices = @transform_0, window_bounds = array<i64: 8, 27>}, {transform_indices = @transform_1, window_bounds = array<i64: 27, 128>}, {pipeline_mode = #tpu.pipeline_mode<synchronous>, transform_indices = @transform_2, window_bounds = array<i64: 8, 1>}, {pipeline_mode = #tpu.pipeline_mode<synchronous>, transform_indices = @transform_3, window_bounds = array<i64: 8, 1>}, {transform_indices = @transform_4, window_bounds = array<i64: 8, 128>}]} {
    %c0_i32 = arith.constant 0 : i32
    %0 = arith.cmpi eq, %arg0, %c0_i32 : i32
    %1 = arith.extui %0 : i1 to i32
    %c0_i32_0 = arith.constant 0 : i32
    %2 = arith.cmpi ne, %1, %c0_i32_0 : i32
    scf.if %2 {
      %c0_i32_2 = arith.constant 0 : i32
      %6 = arith.cmpi eq, %arg1, %c0_i32_2 : i32
      %7 = arith.extui %6 : i1 to i32
      %c0_i32_3 = arith.constant 0 : i32
      %8 = arith.cmpi ne, %7, %c0_i32_3 : i32
      scf.if %8 {
        %cst_14 = arith.constant 0.000000e+00 : f32
        %21 = vector.broadcast %cst_14 : f32 to vector<8x1xf32>
        %c0_15 = arith.constant 0 : index
        %c0_16 = arith.constant 0 : index
        %22 = vector.load %arg8[%c0_15, %c0_16] : memref<8x1xf32, #tpu.memory_space<vmem>>, vector<8x1xf32>
        tpu.vector_store %arg8[%c0_15, %c0_16], %21 {strides = array<i32>} : memref<8x1xf32, #tpu.memory_space<vmem>>, vector<8x1xf32>,
      } else {
      }
      %c0 = arith.constant 0 : index
      %c0_4 = arith.constant 0 : index
      %9 = vector.load %arg2[%c0, %c0_4] : memref<8x27xf32, #tpu.memory_space<vmem>>, vector<8x27xf32>
      %c0_5 = arith.constant 0 : index
      %c0_6 = arith.constant 0 : index
      %10 = vector.load %arg3[%c0_5, %c0_6] : memref<27x128xf32, #tpu.memory_space<vmem>>, vector<27x128xf32>
      %cst = arith.constant dense<0.000000e+00> : vector<8x128xf32>
      %11 = tpu.matmul %9, %10, %cst {dimension_numbers = #tpu.dot_dimension_numbers<[1], [0], [0], [1], [0, 0, 1, 1], [], []>} : vector<8x27xf32>, vector<27x128xf32>, vector<8x128xf32> -> vector<8x128xf32>
      %12 = arith.index_cast %arg1 : i32 to index
      %c0_7 = arith.constant 0 : index
      %c0_8 = arith.constant 0 : index
      %13 = vector.load %arg7[%12, %c0_7, %c0_8] : memref<1x8x128xf32, #tpu.memory_space<vmem>>, vector<1x8x128xf32>
      %14 = vector.shape_cast %13 : vector<1x8x128xf32> to vector<8x128xf32>
      %15 = vector.shape_cast %11 : vector<8x128xf32> to vector<1x8x128xf32>
      tpu.vector_store %arg7[%12, %c0_7, %c0_8], %15 {strides = array<i32>} : memref<1x8x128xf32, #tpu.memory_space<vmem>>, vector<1x8x128xf32>,
      %c0_9 = arith.constant 0 : index
      %c0_10 = arith.constant 0 : index
      %16 = vector.load %arg8[%c0_9, %c0_10] : memref<8x1xf32, #tpu.memory_space<vmem>>, vector<8x1xf32>
      %cst_11 = arith.constant dense<0.000000e+00> : vector<8xf32>
      %17 = vector.multi_reduction <add>, %11, %cst_11 [1] : vector<8x128xf32> to vector<8xf32>
      %18 = vector.shape_cast %17 : vector<8xf32> to vector<8x1xf32>
      %19 = arith.addf %16, %18 : vector<8x1xf32>
      %c0_12 = arith.constant 0 : index
      %c0_13 = arith.constant 0 : index
      %20 = vector.load %arg8[%c0_12, %c0_13] : memref<8x1xf32, #tpu.memory_space<vmem>>, vector<8x1xf32>
      tpu.vector_store %arg8[%c0_12, %c0_13], %19 {strides = array<i32>} : memref<8x1xf32, #tpu.memory_space<vmem>>, vector<8x1xf32>,
    } else {
    }
    %c1_i32 = arith.constant 1 : i32
    %3 = arith.cmpi eq, %arg0, %c1_i32 : i32
    %4 = arith.extui %3 : i1 to i32
    %c0_i32_1 = arith.constant 0 : i32
    %5 = arith.cmpi ne, %4, %c0_i32_1 : i32
    scf.if %5 {
      %c0_i32_2 = arith.constant 0 : i32
      %6 = arith.cmpi eq, %arg1, %c0_i32_2 : i32
      %7 = arith.extui %6 : i1 to i32
      %c0_i32_3 = arith.constant 0 : i32
      %8 = arith.cmpi ne, %7, %c0_i32_3 : i32
      scf.if %8 {
        %c0_11 = arith.constant 0 : index
        %c0_12 = arith.constant 0 : index
        %19 = vector.load %arg8[%c0_11, %c0_12] : memref<8x1xf32, #tpu.memory_space<vmem>>, vector<8x1xf32>
        %cst = arith.constant 0.0102040814 : f32
        %20 = vector.broadcast %cst : f32 to vector<8x1xf32>
        %21 = arith.mulf %19, %20 : vector<8x1xf32>
        %c0_13 = arith.constant 0 : index
        %c0_14 = arith.constant 0 : index
        %c0_15 = arith.constant 0 : index
        %22 = vector.load %arg7[%c0_13, %c0_14, %c0_15] : memref<1x8x128xf32, #tpu.memory_space<vmem>>, vector<1x8x128xf32>
        %23 = vector.shape_cast %21 : vector<8x1xf32> to vector<1x8x1xf32>
        %24 = vector.broadcast %23 : vector<1x8x1xf32> to vector<1x8x128xf32>
        %25 = arith.subf %22, %24 : vector<1x8x128xf32>
        %26 = arith.mulf %25, %25 : vector<1x8x128xf32>
        %cst_16 = arith.constant dense<0.000000e+00> : vector<1x8xf32>
        %27 = vector.multi_reduction <add>, %26, %cst_16 [2] : vector<1x8x128xf32> to vector<1x8xf32>
        %28 = vector.shape_cast %27 : vector<1x8xf32> to vector<1x8x1xf32>
        %cst_17 = arith.constant dense<0.000000e+00> : vector<8x1xf32>
        %29 = vector.multi_reduction <add>, %28, %cst_17 [0] : vector<1x8x1xf32> to vector<8x1xf32>
        %cst_18 = arith.constant 3.000000e+01 : f32
        %30 = vector.broadcast %cst_18 : f32 to vector<8x1xf32>
        %31 = arith.mulf %30, %21 : vector<8x1xf32>
        %32 = arith.mulf %31, %21 : vector<8x1xf32>
        %33 = arith.subf %29, %32 : vector<8x1xf32>
        %cst_19 = arith.constant 0.0102040814 : f32
        %34 = vector.broadcast %cst_19 : f32 to vector<8x1xf32>
        %35 = arith.mulf %33, %34 : vector<8x1xf32>
        %c0_20 = arith.constant 0 : index
        %c0_21 = arith.constant 0 : index
        %36 = vector.load %arg4[%c0_20, %c0_21] : memref<8x1xf32, #tpu.memory_space<vmem>>, vector<8x1xf32>
        %cst_22 = arith.constant 9.99999974E-6 : f32
        %37 = vector.broadcast %cst_22 : f32 to vector<8x1xf32>
        %38 = arith.addf %35, %37 : vector<8x1xf32>
        %39 = math.rsqrt %38 : vector<8x1xf32>
        %40 = arith.mulf %36, %39 : vector<8x1xf32>
        %c0_23 = arith.constant 0 : index
        %c0_24 = arith.constant 0 : index
        %41 = vector.load %arg9[%c0_23, %c0_24] : memref<8x1xf32, #tpu.memory_space<vmem>>, vector<8x1xf32>
        tpu.vector_store %arg9[%c0_23, %c0_24], %40 {strides = array<i32>} : memref<8x1xf32, #tpu.memory_space<vmem>>, vector<8x1xf32>,
        %c0_25 = arith.constant 0 : index
        %c0_26 = arith.constant 0 : index
        %42 = vector.load %arg5[%c0_25, %c0_26] : memref<8x1xf32, #tpu.memory_space<vmem>>, vector<8x1xf32>
        %43 = arith.mulf %21, %40 : vector<8x1xf32>
        %44 = arith.subf %42, %43 : vector<8x1xf32>
        %c0_27 = arith.constant 0 : index
        %c0_28 = arith.constant 0 : index
        %45 = vector.load %arg10[%c0_27, %c0_28] : memref<8x1xf32, #tpu.memory_space<vmem>>, vector<8x1xf32>
        tpu.vector_store %arg10[%c0_27, %c0_28], %44 {strides = array<i32>} : memref<8x1xf32, #tpu.memory_space<vmem>>, vector<8x1xf32>,
      } else {
      }
      %9 = arith.index_cast %arg1 : i32 to index
      %c0 = arith.constant 0 : index
      %c0_4 = arith.constant 0 : index
      %10 = vector.load %arg7[%9, %c0, %c0_4] : memref<1x8x128xf32, #tpu.memory_space<vmem>>, vector<1x8x128xf32>
      %11 = vector.shape_cast %10 : vector<1x8x128xf32> to vector<8x128xf32>
      %c0_5 = arith.constant 0 : index
      %c0_6 = arith.constant 0 : index
      %12 = vector.load %arg9[%c0_5, %c0_6] : memref<8x1xf32, #tpu.memory_space<vmem>>, vector<8x1xf32>
      %13 = vector.broadcast %12 : vector<8x1xf32> to vector<8x128xf32>
      %14 = arith.mulf %11, %13 : vector<8x128xf32>
      %c0_7 = arith.constant 0 : index
      %c0_8 = arith.constant 0 : index
      %15 = vector.load %arg10[%c0_7, %c0_8] : memref<8x1xf32, #tpu.memory_space<vmem>>, vector<8x1xf32>
      %16 = vector.broadcast %15 : vector<8x1xf32> to vector<8x128xf32>
      %17 = arith.addf %14, %16 : vector<8x128xf32>
      %c0_9 = arith.constant 0 : index
      %c0_10 = arith.constant 0 : index
      %18 = vector.load %arg6[%c0_9, %c0_10] : memref<8x128xf32, #tpu.memory_space<vmem>>, vector<8x128xf32>
      tpu.vector_store %arg6[%c0_9, %c0_10], %17 {strides = array<i32>} : memref<8x128xf32, #tpu.memory_space<vmem>>, vector<8x128xf32>,
    } else {
    }
    return
  }
  func.func @transform_0(%arg0: i32, %arg1: i32) -> (i32, i32) {
    %c0_i32 = arith.constant 0 : i32
    %c0_i32_0 = arith.constant 0 : i32
    %c0_i32_1 = arith.constant 0 : i32
    return %c0_i32, %c0_i32_0 : i32, i32
  }
  func.func @transform_1(%arg0: i32, %arg1: i32) -> (i32, i32) {
    %c1_i32 = arith.constant 1 : i32
    %0 = arith.subi %c1_i32, %arg0 : i32
    %1 = arith.muli %arg1, %0 : i32
    %c0_i32 = arith.constant 0 : i32
    %c0_i32_0 = arith.constant 0 : i32
    return %c0_i32, %1 : i32, i32
  }
  func.func @transform_2(%arg0: i32, %arg1: i32) -> (i32, i32) {
    %c0_i32 = arith.constant 0 : i32
    %c0_i32_0 = arith.constant 0 : i32
    %c0_i32_1 = arith.constant 0 : i32
    return %c0_i32, %c0_i32_0 : i32, i32
  }
  func.func @transform_3(%arg0: i32, %arg1: i32) -> (i32, i32) {
    %c0_i32 = arith.constant 0 : i32
    %c0_i32_0 = arith.constant 0 : i32
    %c0_i32_1 = arith.constant 0 : i32
    return %c0_i32, %c0_i32_0 : i32, i32
  }
  func.func @transform_4(%arg0: i32, %arg1: i32) -> (i32, i32) {
    %0 = arith.muli %arg1, %arg0 : i32
    %c0_i32 = arith.constant 0 : i32
    %c0_i32_0 = arith.constant 0 : i32
    return %c0_i32, %0 : i32, i32
  }
}

</mosaic_0001>

<llo_original>
// kernel: tpu_custom_call.1
$region0: #{tpu_custom_call.1}
  #allocation0 [shape = 'u32[]', space=smem, size = 0x4, offset = 0x4, fixed_abs, tag = 'smem constant byte address 0x4 - core index']
  #allocation1 [shape = 'u32[72,128]{1,0:T(1,128)}', space=vmem, size = 0x9000, scoped, tag = 'internal scratch']
  #allocation2 [shape = 'f32[1,8,128]{2,1,0:T(8,128)}', space=vmem, size = 0x1000, scoped, tag = 'scratch operand']
  #allocation3 [shape = 'f32[8,1]{1,0:T(8,128)}', space=vmem, size = 0x1000, scoped, tag = 'scratch operand']
  #allocation4 [shape = 'f32[8,1]{1,0:T(8,128)}', space=vmem, size = 0x1000, scoped, tag = 'scratch operand']
  #allocation5 [shape = 'f32[8,1]{1,0:T(8,128)}', space=vmem, size = 0x1000, scoped, tag = 'scratch operand']
  %s0 = inlined_call_operand.vmem [shape: f32[8,27], index: 0, kind: input, shape index: {}]
  %s1 = inlined_call_operand.hbm [shape: f32[27,128], index: 1, kind: input, shape index: {}]
  %s2 = inlined_call_operand.vmem [shape: f32[8,1], index: 2, kind: input, shape index: {}]
  %s3 = inlined_call_operand.vmem [shape: f32[8,1], index: 3, kind: input, shape index: {}]
  %s4 = inlined_call_operand.hbm [shape: f32[8,128], index: 4, kind: output, shape index: {}]
  %s5 = sld [smem:[#allocation0]]
  $region69: #{tpu_custom_call.1} parent=0
    _
  %s7 = ssub.s32 1, %s5
  %s8 = scalar_select 0, %s7, %s5
  $region1: #{tpu_custom_call.1} parent=0
    #allocation6 [shape = 'u8[32768]{0}', space=vmem, size = 0x8000, scoped, tag = 'input window, operand 1']
    #allocation7 [shape = 's32[2]{0}', space=sflag, size = 0x8, scoped, tag = 'scoped memory for tpu_custom_call.1']
    #allocation8 [shape = 's32[2]{0}', space=sflag, size = 0x8, scoped, tag = 'scoped memory for tpu_custom_call.1']
    #allocation9 [shape = 'u8[8192]{0}', space=vmem, size = 0x2000, scoped, tag = 'output window, operand 0']
    %9 = vsyncpa [#allocation7], 0
    %s10 = scalar_lea.sflag [#allocation7], 1
    %11 = vsyncpa %s10, 0
    %12 = vsyncpa [#allocation8], 0
    %s13 = scalar_lea.sflag [#allocation8], 1
    %14 = vsyncpa %s13, 0
    loop: start=0, step=1, limit=4
    $region2: #{tpu_custom_call.1} parent=1 // loop_pre_header
      _
    $region3: #{tpu_custom_call.1} parent=1 // loop_header
      %s16 = sphi 0, %s20
      %p17 = scmp.ge.s32.totalorder %s16, 4
      %s23 = sphi 0, %s35
      %s24 = sphi 0, %s31
      %s25 = sphi 0, %s23
      %s26 = sphi 0, %s24
      %s27 = sphi 0, %s25
      %s28 = sphi 0, %s26
      %s36 = sphi 0, %s36
      %s38 = sphi 0, %s36
      %s39 = sphi 0, %s38
      %s53 = sphi 0, %s39
      %s63 = sphi 0, %s65
      %s66 = sphi 0, %s63
      %s67 = sphi 0, %s66
      %s83 = sphi 0, %s67
      %s87 = sphi 0, %s87
      %s89 = sphi 0, %s87
      %s90 = sphi 0, %s89
      %s104 = sphi 0, %s90
      %s108 = sphi 0, %s108
      %s110 = sphi 0, %s108
      %s111 = sphi 0, %s110
      %s125 = sphi 0, %s111
      %s133 = sphi 0, %s135
      %s136 = sphi 0, %s133
      %s137 = sphi 0, %s136
      %s153 = sphi 0, %s137
    $region4: #{tpu_custom_call.1} parent=1 // loop_header_branch
      %19 = sbr.rel (%p17) target = $region8
    $region5: #{tpu_custom_call.1} parent=1 // loop_body
      %s21 = ssub.s32 %s16, 1
      %s22 = ssub.s32 %s16, 2
      %s29 = sadd.s32 1, %s24
      %p30 = scmp.ge.s32.totalorder %s29, 1
      %s31 = scalar_select %p30, 0, %s29
      %s32 = sadd.s32 1, %s23
      %s33 = scalar_select %p30, %s32, %s23
      %p34 = scmp.ge.s32.totalorder %s33, 2
      %s35 = scalar_select %p34, 0, %s33
      %s37 = sadd.s32 %s36, 1
      %p40 = scmp.eq.s32.totalorder %s16, 1
      %p41 = scmp.ne.s32.totalorder %s36, %s38
      %p42 = scmp.eq.s32.totalorder %s16, 0
      %p43 = por %p41, %p42
      %p44 = scmp.ne.s32.totalorder %s36, %s38
      %p45 = scmp.eq.s32.totalorder %s21, 1
      %p46 = por %p44, %p45
      %p47 = scmp.ne.s32.totalorder %s38, %s39
      %p48 = scmp.eq.s32.totalorder %s21, 0
      %p49 = por %p47, %p48
      %p50 = scmp.ne.s32.totalorder %s38, %s39
      %p51 = scmp.eq.s32.totalorder %s22, 1
      %p52 = por %p50, %p51
      %p54 = scmp.ne.s32.totalorder %s39, %s53
      %p55 = scmp.eq.s32.totalorder %s22, 0
      %p56 = por %p54, %p55
      %s57 = ssub.s32 1, %s23
      %s58 = smul.u32 %s24, %s57
      %s59 = ssub.s32 1, %s35
      %s60 = smul.u32 %s31, %s59
      %s61 = ssub.s32 %s58, %s60
      %p62 = scmp.eq.s32.totalorder %s61, 0
      %s64 = sadd.s32 %s63, 1
      %s65 = scalar_select %p62, %s63, %s64
      %p68 = pneg %p62
      %p69 = scmp.eq.s32.totalorder %s16, 1
      %p70 = por %p68, %p69
      %p71 = scmp.ne.s32.totalorder %s63, %s66
      %p72 = scmp.eq.s32.totalorder %s16, 0
      %p73 = por %p71, %p72
      %p74 = scmp.ne.s32.totalorder %s63, %s66
      %p75 = scmp.eq.s32.totalorder %s21, 1
      %p76 = por %p74, %p75
      %p77 = scmp.ne.s32.totalorder %s66, %s67
      %p78 = scmp.eq.s32.totalorder %s21, 0
      %p79 = por %p77, %p78
      %p80 = scmp.ne.s32.totalorder %s66, %s67
      %p81 = scmp.eq.s32.totalorder %s22, 1
      %p82 = por %p80, %p81
      %p84 = scmp.ne.s32.totalorder %s67, %s83
      %p85 = scmp.eq.s32.totalorder %s22, 0
      %p86 = por %p84, %p85
      %s88 = sadd.s32 %s87, 1
      %p91 = scmp.eq.s32.totalorder %s16, 1
      %p92 = scmp.ne.s32.totalorder %s87, %s89
      %p93 = scmp.eq.s32.totalorder %s16, 0
      %p94 = por %p92, %p93
      %p95 = scmp.ne.s32.totalorder %s87, %s89
      %p96 = scmp.eq.s32.totalorder %s21, 1
      %p97 = por %p95, %p96
      %p98 = scmp.ne.s32.totalorder %s89, %s90
      %p99 = scmp.eq.s32.totalorder %s21, 0
      %p100 = por %p98, %p99
      %p101 = scmp.ne.s32.totalorder %s89, %s90
      %p102 = scmp.eq.s32.totalorder %s22, 1
      %p103 = por %p101, %p102
      %p105 = scmp.ne.s32.totalorder %s90, %s104
      %p106 = scmp.eq.s32.totalorder %s22, 0
      %p107 = por %p105, %p106
      %s109 = sadd.s32 %s108, 1
      %p112 = scmp.eq.s32.totalorder %s16, 1
      %p113 = scmp.ne.s32.totalorder %s108, %s110
      %p114 = scmp.eq.s32.totalorder %s16, 0
      %p115 = por %p113, %p114
      %p116 = scmp.ne.s32.totalorder %s108, %s110
      %p117 = scmp.eq.s32.totalorder %s21, 1
      %p118 = por %p116, %p117
      %p119 = scmp.ne.s32.totalorder %s110, %s111
      %p120 = scmp.eq.s32.totalorder %s21, 0
      %p121 = por %p119, %p120
      %p122 = scmp.ne.s32.totalorder %s110, %s111
      %p123 = scmp.eq.s32.totalorder %s22, 1
      %p124 = por %p122, %p123
      %p126 = scmp.ne.s32.totalorder %s111, %s125
      %p127 = scmp.eq.s32.totalorder %s22, 0
      %p128 = por %p126, %p127
      %s129 = smul.u32 %s24, %s23
      %s130 = smul.u32 %s31, %s35
      %s131 = ssub.s32 %s129, %s130
      %p132 = scmp.eq.s32.totalorder %s131, 0
      %s134 = sadd.s32 %s133, 1
      %s135 = scalar_select %p132, %s133, %s134
      %p138 = pneg %p132
      %p139 = scmp.eq.s32.totalorder %s16, 1
      %p140 = por %p138, %p139
      %p141 = scmp.ne.s32.totalorder %s133, %s136
      %p142 = scmp.eq.s32.totalorder %s16, 0
      %p143 = por %p141, %p142
      %p144 = scmp.ne.s32.totalorder %s133, %s136
      %p145 = scmp.eq.s32.totalorder %s21, 1
      %p146 = por %p144, %p145
      %p147 = scmp.ne.s32.totalorder %s136, %s137
      %p148 = scmp.eq.s32.totalorder %s21, 0
      %p149 = por %p147, %p148
      %p150 = scmp.ne.s32.totalorder %s136, %s137
      %p151 = scmp.eq.s32.totalorder %s22, 1
      %p152 = por %p150, %p151
      %p154 = scmp.ne.s32.totalorder %s137, %s153
      %p155 = scmp.eq.s32.totalorder %s22, 0
      %p156 = por %p154, %p155
      %p157 = scmp.le.s32.totalorder 1, %s16
      %p158 = scmp.lt.s32.totalorder %s16, 3
      %p159 = pnand %p157, %p158
      %p160 = pneg %p159
      // Predicated region
      $region9: #{tpu_custom_call.1} parent=5 // pred_check
        _
      $region10: #{tpu_custom_call.1} parent=5 // pred_check_branch
        %162 = sbr.rel (%p159) target = $region12
      $region11: #{tpu_custom_call.1} parent=5 // pred_region
        %s163 = ssub.s32 %s16, 1
        // Predicated region
        $region13: #{tpu_custom_call.1} parent=11 // pred_check
          %p164 = pneg %p49
        $region14: #{tpu_custom_call.1} parent=11 // pred_check_branch
          %166 = sbr.rel (%p164) target = $region16
        $region15: #{tpu_custom_call.1} parent=11 // pred_region
          _
        $region16: #{tpu_custom_call.1} parent=11 // pred_fallthru
          _
        // Predicated region
        $region17: #{tpu_custom_call.1} parent=11 // pred_check
          %p167 = pneg %p100
        $region18: #{tpu_custom_call.1} parent=11 // pred_check_branch
          %169 = sbr.rel (%p167) target = $region20
        $region19: #{tpu_custom_call.1} parent=11 // pred_region
          _
        $region20: #{tpu_custom_call.1} parent=11 // pred_fallthru
          _
        // Predicated region
        $region21: #{tpu_custom_call.1} parent=11 // pred_check
          %p170 = pneg %p121
        $region22: #{tpu_custom_call.1} parent=11 // pred_check_branch
          %172 = sbr.rel (%p170) target = $region24
        $region23: #{tpu_custom_call.1} parent=11 // pred_region
          _
        $region24: #{tpu_custom_call.1} parent=11 // pred_fallthru
          _
      $region12: #{tpu_custom_call.1} parent=5 // pred_fallthru
        _
      %p173 = scmp.lt.s32.totalorder %s16, 2
      // Predicated region
      $region25: #{tpu_custom_call.1} parent=5 // pred_check
        %p174 = pneg %p173
      $region26: #{tpu_custom_call.1} parent=5 // pred_check_branch
        %176 = sbr.rel (%p174) target = $region28
      $region27: #{tpu_custom_call.1} parent=5 // pred_region
        // Predicated region
        $region29: #{tpu_custom_call.1} parent=27 // pred_check
          %p177 = pneg %p73
        $region30: #{tpu_custom_call.1} parent=27 // pred_check_branch
          %179 = sbr.rel (%p177) target = $region32
        $region31: #{tpu_custom_call.1} parent=27 // pred_region
          %s180 = sand.u32 %s63, 1
          %s181 = scalar_lea.sflag [#allocation7], %s180
          %s182 = sand.u32 %s63, 1
          %s183 = smul.addr %s182, 32
          %s184 = scalar_lea.vmem [#allocation6], %s183
          %s185 = ssub.s32 1, %s23
          %s186 = smul.u32 %s24, %s185
          %188 = vsyncadd %s181, 0
          %s189 = smul.addr %s186, 8
          %s190 = scalar_lea.hbm %s1, %s189
          %s191 = sshll.u32 %s190, 4
          %s192 = int_to_ptr.hbm [resolvable:$true] %s191
          %s193 = sshll.u32 %s184, 4
          %s194 = int_to_ptr.vmem [resolvable:$true] %s193
          %199 = dma.hbm_to_vmem [thread:$0]  %s192, 512, %s194, %s181, 128, 128, 8
        $region32: #{tpu_custom_call.1} parent=27 // pred_fallthru
          _
      $region28: #{tpu_custom_call.1} parent=5 // pred_fallthru
        _
      %p200 = scmp.le.s32.totalorder 1, %s16
      %p201 = scmp.lt.s32.totalorder %s16, 3
      %p202 = pnand %p200, %p201
      %p203 = pneg %p202
      // Predicated region
      $region33: #{tpu_custom_call.1} parent=5 // pred_check
        _
      $region34: #{tpu_custom_call.1} parent=5 // pred_check_branch
        %205 = sbr.rel (%p202) target = $region36
      $region35: #{tpu_custom_call.1} parent=5 // pred_region
        %s206 = ssub.s32 %s16, 1
        %s207 = sand.u32 %s66, 1
        %s208 = scalar_lea.sflag [#allocation7], %s207
        %s209 = sand.u32 %s66, 1
        %s210 = smul.addr %s209, 32
        %s211 = scalar_lea.vmem [#allocation6], %s210
        // Predicated region
        $region37: #{tpu_custom_call.1} parent=35 // pred_check
          %p212 = pneg %p79
        $region38: #{tpu_custom_call.1} parent=35 // pred_check_branch
          %214 = sbr.rel (%p212) target = $region40
        $region39: #{tpu_custom_call.1} parent=35 // pred_region
          %216 = dma.done %s208, 512
        $region40: #{tpu_custom_call.1} parent=35 // pred_fallthru
          _
        %p217 = pneg %p49
        %p218 = pneg %p46
        %s219 = sand.u32 %s66, 1
        %s220 = scalar_lea.sflag [#allocation7], %s219
        %s221 = sand.u32 %s66, 1
        %s222 = smul.addr %s221, 32
        %s223 = scalar_lea.vmem [#allocation6], %s222
        %p224 = pneg %p79
        %p225 = pneg %p76
        %p226 = pneg %p100
        %p227 = pneg %p97
        %p228 = pneg %p121
        %p229 = pneg %p118
        %p230 = pneg %p149
        %p231 = pneg %p146
        %s232 = sand.u32 %s136, 1
        %s233 = scalar_lea.sflag [#allocation8], %s232
        %s234 = sand.u32 %s136, 1
        %s235 = smul.addr %s234, 8
        %s236 = scalar_lea.vmem [#allocation9], %s235
        %s237 = ssub.s32 1, %s25
        %s238 = smul.u32 %s26, %s237
        %s239 = smul.u32 %s26, %s25
        %p240 = scmp.eq.s32.totalorder %s25, 0
        // Predicated region
        $region41: #{tpu_custom_call.1} parent=35 // pred_check
          %p241 = pneg %p240
        $region42: #{tpu_custom_call.1} parent=35 // pred_check_branch
          %243 = sbr.rel (%p241) target = $region44
        $region43: #{tpu_custom_call.1} parent=35 // pred_region
          %p244 = scmp.eq.s32.totalorder %s26, 0
          // Predicated region
          $region45: #{tpu_custom_call.1} parent=43 // pred_check
            %p245 = pneg %p244
          $region46: #{tpu_custom_call.1} parent=43 // pred_check_branch
            %247 = sbr.rel (%p245) target = $region48
          $region47: #{tpu_custom_call.1} parent=43 // pred_region
            %vm248 = vcmask 7168
            %249 = vst.msk [vmem:[#allocation3] sm:$0xff] %vm248, 0.0
          $region48: #{tpu_custom_call.1} parent=43 // pred_fallthru
            _
          %v250 = vld [vmem:[%s0] sm:$0xff]
          %v251 = vld [vmem:[%s211] sm:$0xff]
          %v252 = vld [vmem:[%s211 + $0x8] sm:$0xff]
          %v253 = vld [vmem:[%s211 + $0x10] sm:$0xff]
          %v254 = vld [vmem:[%s211 + $0x18] sm:$0x7]
          %vm255 = vcmask 220160
          %v257 = vsel %vm255, %v250, 0
          %vm259 = vcmask 1042432
          %v261 = vsel %vm259, %v254, 0
          %263 = vmatpush.msra.mxu0 0.0
          %264 = vmatpush.msra.mxu0 0.0
          %265 = vmatpush.msra.mxu0 0.0
          %266 = vmatpush.msra.mxu0 0.0
          %267 = vmatpush.msra.mxu0 0.0
          %268 = vmatpush.msra.mxu0 0.0
          %269 = vmatpush.msra.mxu0 0.0
          %270 = vmatpush.msra.mxu0 0.0
          %271 = vmatpush.msra.mxu0 0.0
          %272 = vmatpush.msra.mxu0 0.0
          %273 = vmatpush.msra.mxu0 0.0
          %274 = vmatpush.msra.mxu0 0.0
          %275 = vmatpush.msra.mxu0 %v261
          %276 = vmatpush.msra.mxu0 %v253
          %277 = vmatpush.msra.mxu0 %v252
          %278 = vmatpush.msra.mxu0 %v251
          %279 = vmatmul.f32.gmra.mxu0 %v257
          %v280 = vpop.f32.mrf.mxu0
          %v281 = vadd.f32 0.0, %v280
          %282 = vdwg.mxu0
          %s283 = smul.u32 %s26, 8
          %s284 = scalar_lea.vmem [#allocation2], %s283
          %285 = vst [vmem:[%s284] sm:$0xff] %v281
          %v286 = vld [vmem:[#allocation3] sm:$0xff]
          %287 = vadd.xlane.f32.xlu0 %v281
          %v288 = vpop.xlane.xlu0 %287
          %v289 = vadd.f32 %v286, %v288
          %vm290 = vcmask 7168
          %291 = vst.msk [vmem:[#allocation3] sm:$0xff] %vm290, %v289
        $region44: #{tpu_custom_call.1} parent=35 // pred_fallthru
          _
        %p292 = scmp.eq.s32.totalorder %s25, 1
        // Predicated region
        $region49: #{tpu_custom_call.1} parent=35 // pred_check
          %p293 = pneg %p292
        $region50: #{tpu_custom_call.1} parent=35 // pred_check_branch
          %295 = sbr.rel (%p293) target = $region52
        $region51: #{tpu_custom_call.1} parent=35 // pred_region
          %p296 = scmp.eq.s32.totalorder %s26, 0
          // Predicated region
          $region53: #{tpu_custom_call.1} parent=51 // pred_check
            %p297 = pneg %p296
          $region54: #{tpu_custom_call.1} parent=51 // pred_check_branch
            %299 = sbr.rel (%p297) target = $region56
          $region55: #{tpu_custom_call.1} parent=51 // pred_region
            %v300 = vld [vmem:[#allocation3] sm:$0xff]
            %v301 = vmul.f32 %v300, 0.010204081
            %v302 = vld [vmem:[#allocation2] sm:$0xff]
            %304 = vset.pattern.permute.xlu0 0
            %305 = vperm.xlu0 %304, %v301
            %v306 = vpop.permute.xlu0 %305
            %v308 = vsub.f32 %v302, %v306
            %v309 = vmul.f32 %v308, %v308
            %310 = vadd.xlane.f32.xlu0 %v309
            %v311 = vpop.xlane.xlu0 %310
            %v312 = vadd.f32 %v311, 0.0
            %v313 = vmul.f32 %v301, 30.0
            %v314 = vmul.f32 %v313, %v301
            %v315 = vsub.f32 %v312, %v314
            %v316 = vmul.f32 %v315, 0.010204081
            %v317 = vld [vmem:[%s2] sm:$0xff]
            %v318 = vadd.f32 %v316, 1e-05
            %v319 = vrsqrt.pop %v318
            %v320 = vmul.f32 %v319, %v318
            %v321 = vmul.f32 %v320, %v319
            %v322 = vmul.f32 0.5, %v321
            %v323 = vsub.f32 1.5, %v322
            %v324 = vmul.f32 %v319, %v323
            %vm325 = vweird.f32 %v318
            %vm326 = vweird.f32 %v319
            %vm327 = vmor %vm325, %vm326
            %v328 = vsel %vm327, %v319, %v324
            %v329 = vmul.f32 %v317, %v328
            %vm330 = vcmask 7168
            %331 = vst.msk [vmem:[#allocation4] sm:$0xff] %vm330, %v329
            %v332 = vld [vmem:[%s3] sm:$0xff]
            %v333 = vmul.f32 %v301, %v329
            %v334 = vsub.f32 %v332, %v333
            %335 = vst.msk [vmem:[#allocation5] sm:$0xff] %vm330, %v334
          $region56: #{tpu_custom_call.1} parent=51 // pred_fallthru
            _
          %s336 = smul.u32 %s26, 8
          %s337 = scalar_lea.vmem [#allocation2], %s336
          %v338 = vld [vmem:[%s337] sm:$0xff]
          %v339 = vld [vmem:[#allocation4] sm:$0xff]
          %341 = vset.pattern.permute.xlu0 0
          %342 = vperm.xlu0 %341, %v339
          %v343 = vpop.permute.xlu0 %342
          %v345 = vmul.f32 %v338, %v343
          %v346 = vld [vmem:[#allocation5] sm:$0xff]
          %348 = vset.pattern.permute.xlu0 0
          %349 = vperm.xlu0 %348, %v346
          %v350 = vpop.permute.xlu0 %349
          %v352 = vadd.f32 %v345, %v350
          %353 = vst [vmem:[%s236] sm:$0xff] %v352
        $region52: #{tpu_custom_call.1} parent=35 // pred_fallthru
          _
        %s354 = sand.u32 %s136, 1
        %s355 = scalar_lea.sflag [#allocation8], %s354
        %s356 = sand.u32 %s136, 1
        %s357 = smul.addr %s356, 8
        %s358 = scalar_lea.vmem [#allocation9], %s357
        // Predicated region
        $region57: #{tpu_custom_call.1} parent=35 // pred_check
          %p359 = pneg %p146
        $region58: #{tpu_custom_call.1} parent=35 // pred_check_branch
          %361 = sbr.rel (%p359) target = $region60
        $region59: #{tpu_custom_call.1} parent=35 // pred_region
          %s362 = smul.u32 %s26, %s25
          %364 = vsyncadd %s355, 0
          %s365 = smul.addr %s362, 8
          %s366 = scalar_lea.hbm %s4, %s365
          %s368 = sshll.u32 %s358, 4
          %s369 = int_to_ptr.vmem [resolvable:$true] %s368
          %s370 = sshll.u32 %s366, 4
          %s371 = int_to_ptr.hbm [resolvable:$true] %s370
          %373 = dma.vmem_to_hbm [thread:$0]  %s369, 128, %s371, %s355
        $region60: #{tpu_custom_call.1} parent=35 // pred_fallthru
          _
      $region36: #{tpu_custom_call.1} parent=5 // pred_fallthru
        _
      %p374 = scmp.le.s32.totalorder 2, %s16
      // Predicated region
      $region61: #{tpu_custom_call.1} parent=5 // pred_check
        %p375 = pneg %p374
      $region62: #{tpu_custom_call.1} parent=5 // pred_check_branch
        %377 = sbr.rel (%p375) target = $region64
      $region63: #{tpu_custom_call.1} parent=5 // pred_region
        %s378 = ssub.s32 %s16, 2
        // Predicated region
        $region65: #{tpu_custom_call.1} parent=63 // pred_check
          %p379 = pneg %p152
        $region66: #{tpu_custom_call.1} parent=63 // pred_check_branch
          %381 = sbr.rel (%p379) target = $region68
        $region67: #{tpu_custom_call.1} parent=63 // pred_region
          %s382 = sand.u32 %s137, 1
          %s383 = scalar_lea.sflag [#allocation8], %s382
          %s384 = sand.u32 %s137, 1
          %s385 = smul.addr %s384, 8
          %s386 = scalar_lea.vmem [#allocation9], %s385
          %388 = dma.done %s383, 128
        $region68: #{tpu_custom_call.1} parent=63 // pred_fallthru
          _
      $region64: #{tpu_custom_call.1} parent=5 // pred_fallthru
        _
    $region6: #{tpu_custom_call.1} parent=1 // loop_footer
      %s20 = sadd.s32 1, %s16
    $region7: #{tpu_custom_call.1} parent=1 // loop_footer_branch
      %15 = sbr.rel target = $region3
    $region8: #{tpu_custom_call.1} parent=1 // loop_exit
      _
    %389 = vsyncpa [#allocation7], 1
    %s390 = scalar_lea.sflag [#allocation7], 1
    %391 = vsyncpa %s390, 1
    %392 = vsyncpa [#allocation8], 1
    %s393 = scalar_lea.sflag [#allocation8], 1
    %394 = vsyncpa %s393, 1

</llo_original>
